<compile_context>
chip_gen: v7x
topology: tpu7x:2x2x1
jax: 0.10.0
libtpu: 0.0.40
codegen_flags: <defaults>
</compile_context>

<pallas_src>
import jax
import jax.numpy as jnp
from jax.experimental import pallas as pl
from jax.experimental.pallas import tpu as pltpu


def _gather_rows(idx_ref, table_ref):
    """Gather table rows for a (TM, 1) int32 index column via one-hot matmul."""
    tm = idx_ref.shape[0]
    v = table_ref.shape[0]
    lane = jax.lax.broadcasted_iota(jnp.int32, (tm, v), 1)          # (TM, V)
    onehot = (lane == idx_ref[...]).astype(jnp.float32)             # exact 0/1
    rows = jnp.dot(onehot, table_ref[...],
                   preferred_element_type=jnp.float32,
                   precision=jax.lax.Precision.HIGHEST)              # (TM, V)
    return rows, lane


def _bigram_train_kernel(idx_ref, tgt_ref, table_ref,
                         logits_ref, nll_ref, cnt_ref):
    rows, lane = _gather_rows(idx_ref, table_ref)                    # (TM, V)
    logits_ref[...] = rows                                           # dense tile store

    # --- cross entropy over the whole tile (ignore_index = -1) ---
    t = tgt_ref[...]                                                 # (TM, 1) int32
    m = jnp.max(rows, axis=-1, keepdims=True)                        # (TM, 1)
    lse = m + jnp.log(jnp.sum(jnp.exp(rows - m), axis=-1, keepdims=True))
    tgt_logit = jnp.sum(jnp.where(lane == t, rows, 0.0),
                        axis=-1, keepdims=True)                      # (TM, 1)
    valid = (t != -1).astype(jnp.float32)                            # (TM, 1)

    # Per-group partial sums (combined in the wrapper) -> grid axis is parallel.
    nll_ref[...] = jnp.sum((lse - tgt_logit) * valid, axis=0, keepdims=True)
    cnt_ref[...] = jnp.sum(valid, axis=0, keepdims=True)


def _bigram_infer_kernel(idx_ref, table_ref, logits_ref):
    rows, _ = _gather_rows(idx_ref, table_ref)
    logits_ref[...] = rows


def _pick_tm(n, v):
    """Rows per grid step: as large as a ~24 MiB double-buffered IO budget allows."""
    budget = 24 << 20
    per_row = 2 * v * 4 + 16          # double-buffered logits row + idx/tgt words
    tm = min(1024, max(8, budget // max(per_row, 1)))
    tm = (tm // 8) * 8                # keep sublane dim a multiple of 8
    if tm >= n:
        return n                      # single tile: block == full dim is always legal
    return tm


def _compiler_params(tm, v):
    table_bytes = v * v * 4
    needed = 2 * table_bytes + 4 * tm * v * 4 + 8 * tm * 4 + (1 << 20)
    kwargs = dict(dimension_semantics=("parallel",))
    if needed > (32 << 20):
        kwargs["vmem_limit_bytes"] = int(min(needed, 100 << 20))
    return pltpu.CompilerParams(**kwargs)


def bigram_forward(idx, table, targets=None):
    """Pallas equivalent of Bigram.forward.

    idx: (B, T) int32, table: (V, V) float32, targets: optional (B, T) int32.
    Returns (logits (B, T, V), loss or None).
    """
    b, t = idx.shape
    v = table.shape[0]
    n = b * t

    table_f32 = table.astype(jnp.float32)
    tm = _pick_tm(n, v)
    n_pad = ((n + tm - 1) // tm) * tm
    g = n_pad // tm

    idx_flat = idx.reshape(n).astype(jnp.int32)
    if n_pad != n:
        idx_flat = jnp.pad(idx_flat, (0, n_pad - n))                 # pad tokens -> row 0
    idx_col = idx_flat.reshape(n_pad, 1)

    idx_spec = pl.BlockSpec((tm, 1), lambda gg: (gg, 0))
    table_spec = pl.BlockSpec((v, v), lambda gg: (0, 0))             # VMEM-resident
    logits_spec = pl.BlockSpec((tm, v), lambda gg: (gg, 0))

    if targets is not None:
        tgt_flat = targets.reshape(n).astype(jnp.int32)
        if n_pad != n:
            tgt_flat = jnp.pad(tgt_flat, (0, n_pad - n), constant_values=-1)
        tgt_col = tgt_flat.reshape(n_pad, 1)

        cost = pl.CostEstimate(
            flops=2 * n_pad * v * v + 8 * n_pad * v,
            transcendentals=n_pad * (v + 1),
            bytes_accessed=v * v * 4 + n_pad * v * 4 + 2 * n_pad * 4 + 8 * g,
        )
        logits_pad, nll, cnt = pl.pallas_call(
            _bigram_train_kernel,
            grid=(g,),
            in_specs=[idx_spec, idx_spec, table_spec],               # idx, targets, table
            out_specs=(
                logits_spec,
                pl.BlockSpec((1, 1), lambda gg: (gg, 0)),            # partial nll sum
                pl.BlockSpec((1, 1), lambda gg: (gg, 0)),            # partial valid count
            ),
            out_shape=(
                jax.ShapeDtypeStruct((n_pad, v), jnp.float32),
                jax.ShapeDtypeStruct((g, 1), jnp.float32),
                jax.ShapeDtypeStruct((g, 1), jnp.float32),
            ),
            compiler_params=_compiler_params(tm, v),
            cost_estimate=cost,
        )(idx_col, tgt_col, table_f32)

        logits = (logits_pad[:n] if n_pad != n else logits_pad).reshape(b, t, v)
        loss = jnp.sum(nll) / jnp.maximum(jnp.sum(cnt), 1.0)
        return logits, loss

    # Inference path: gather-only kernel, no cross-entropy work.
    cost = pl.CostEstimate(
        flops=2 * n_pad * v * v,
        transcendentals=0,
        bytes_accessed=v * v * 4 + n_pad * v * 4 + n_pad * 4,
    )
    logits_pad = pl.pallas_call(
        _bigram_infer_kernel,
        grid=(g,),
        in_specs=[idx_spec, table_spec],
        out_specs=logits_spec,
        out_shape=jax.ShapeDtypeStruct((n_pad, v), jnp.float32),
        compiler_params=_compiler_params(tm, v),
        cost_estimate=cost,
    )(idx_col, table_f32)

    logits = (logits_pad[:n] if n_pad != n else logits_pad).reshape(b, t, v)
    return logits, None


def bigram_forward_ref(idx, table, targets=None):
    """Pure-JAX reference for correctness checking."""
    logits = table[idx]  # (B, T, V)
    if targets is None:
        return logits, None
    lf = logits.reshape(-1, logits.shape[-1])
    tf = targets.reshape(-1)
    valid = tf != -1
    safe_t = jnp.where(valid, tf, 0)
    lse = jax.scipy.special.logsumexp(lf, axis=-1)
    nll = lse - jnp.take_along_axis(lf, safe_t[:, None], axis=-1)[:, 0]
    loss = jnp.sum(nll * valid) / jnp.maximum(jnp.sum(valid), 1)
    return logits, loss


if __name__ == "__main__":
    vocab_size = 32
    B, T = 2, 8

    key = jax.random.PRNGKey(0)
    k_table, k_idx, k_tgt = jax.random.split(key, 3)

    # nn.Parameter(torch.zeros((V, V))) in the module; use deterministic random
    # values here so the gather / loss are non-trivial to verify.
    table = jax.random.normal(k_table, (vocab_size, vocab_size),
                              dtype=jnp.float32)

    idx = jax.random.randint(k_idx, (B, T), 0, vocab_size, dtype=jnp.int32)
    targets = jax.random.randint(k_tgt, (B, T), 0, vocab_size, dtype=jnp.int32)
    # sprinkle in an ignore_index position
    targets = targets.at[0, 0].set(-1)

    # Training path (logits + loss).
    logits, loss = bigram_forward(idx, table, targets)
    jax.block_until_ready((logits, loss))

    logits_ref, loss_ref = bigram_forward_ref(idx, table, targets)
    assert jnp.allclose(logits, logits_ref, atol=1e-5, rtol=1e-5)
    assert jnp.allclose(loss, loss_ref, atol=1e-5, rtol=1e-5)

    # Inference path (no targets -> gather-only kernel, loss is None).
    logits_inf, loss_inf = bigram_forward(idx, table, None)
    jax.block_until_ready(logits_inf)
    assert loss_inf is None
    assert jnp.allclose(logits_inf, logits_ref, atol=1e-5, rtol=1e-5)

    print("KERNEL_OK")
</pallas_src>

<mosaic_0001>
module attributes {stable_mosaic.version = 11 : i64} {
  func.func @_bigram_train_kernel(%arg0: i32, %arg1: memref<16x1xi32, #tpu.memory_space<vmem>>, %arg2: memref<16x1xi32, #tpu.memory_space<vmem>>, %arg3: memref<32x32xf32, #tpu.memory_space<vmem>>, %arg4: memref<16x32xf32, #tpu.memory_space<vmem>>, %arg5: memref<1x1xf32, #tpu.memory_space<vmem>>, %arg6: memref<1x1xf32, #tpu.memory_space<vmem>>) attributes {dimension_semantics = [#tpu.dimension_semantics<parallel>], iteration_bounds = array<i64: 1>, scalar_prefetch = 0 : i64, scratch_operands = 0 : i64, tpu.core_type = #tpu.core_type<tc>, window_params = [{transform_indices = @transform_0, window_bounds = array<i64: 16, 1>}, {transform_indices = @transform_1, window_bounds = array<i64: 16, 1>}, {pipeline_mode = #tpu.pipeline_mode<synchronous>, transform_indices = @transform_2, window_bounds = array<i64: 32, 32>}, {transform_indices = @transform_3, window_bounds = array<i64: 16, 32>}, {transform_indices = @transform_4, window_bounds = array<i64: 1, 1>}, {transform_indices = @transform_5, window_bounds = array<i64: 1, 1>}]} {
    %0 = tpu.iota {dimensions = array<i32: 1>} : vector<16x32xi32>
    %c0 = arith.constant 0 : index
    %c0_0 = arith.constant 0 : index
    %1 = vector.load %arg1[%c0, %c0_0] : memref<16x1xi32, #tpu.memory_space<vmem>>, vector<16x1xi32>
    %2 = vector.broadcast %1 : vector<16x1xi32> to vector<16x32xi32>
    %3 = arith.cmpi eq, %0, %2 : vector<16x32xi32>
    %4 = arith.extui %3 : vector<16x32xi1> to vector<16x32xi32>
    %5 = arith.sitofp %4 : vector<16x32xi32> to vector<16x32xf32>
    %c0_1 = arith.constant 0 : index
    %c0_2 = arith.constant 0 : index
    %6 = vector.load %arg3[%c0_1, %c0_2] : memref<32x32xf32, #tpu.memory_space<vmem>>, vector<32x32xf32>
    %cst = arith.constant dense<0.000000e+00> : vector<16x32xf32>
    %7 = tpu.matmul %5, %6, %cst {dimension_numbers = #tpu.dot_dimension_numbers<[1], [0], [0], [1], [0, 0, 1, 1], [], []>, precision = #tpu.contract_precision<fp32>} : vector<16x32xf32>, vector<32x32xf32>, vector<16x32xf32> -> vector<16x32xf32>
    %c0_3 = arith.constant 0 : index
    %c0_4 = arith.constant 0 : index
    %8 = vector.load %arg4[%c0_3, %c0_4] : memref<16x32xf32, #tpu.memory_space<vmem>>, vector<16x32xf32>
    tpu.vector_store %arg4[%c0_3, %c0_4], %7 {strides = array<i32>} : memref<16x32xf32, #tpu.memory_space<vmem>>, vector<16x32xf32>,
    %c0_5 = arith.constant 0 : index
    %c0_6 = arith.constant 0 : index
    %9 = vector.load %arg2[%c0_5, %c0_6] : memref<16x1xi32, #tpu.memory_space<vmem>>, vector<16x1xi32>
    %cst_7 = arith.constant dense<0xFF800000> : vector<16xf32>
    %10 = vector.multi_reduction <maximumf>, %7, %cst_7 [1] : vector<16x32xf32> to vector<16xf32>
    %11 = vector.shape_cast %10 : vector<16xf32> to vector<16x1xf32>
    %12 = vector.broadcast %11 : vector<16x1xf32> to vector<16x32xf32>
    %13 = arith.subf %7, %12 : vector<16x32xf32>
    %14 = math.exp %13 : vector<16x32xf32>
    %cst_8 = arith.constant dense<0.000000e+00> : vector<16xf32>
    %15 = vector.multi_reduction <add>, %14, %cst_8 [1] : vector<16x32xf32> to vector<16xf32>
    %16 = vector.shape_cast %15 : vector<16xf32> to vector<16x1xf32>
    %17 = math.log %16 : vector<16x1xf32>
    %18 = arith.addf %11, %17 : vector<16x1xf32>
    %19 = vector.broadcast %9 : vector<16x1xi32> to vector<16x32xi32>
    %20 = arith.cmpi eq, %0, %19 : vector<16x32xi32>
    %cst_9 = arith.constant 0.000000e+00 : f32
    %21 = vector.broadcast %cst_9 : f32 to vector<16x32xf32>
    %22 = arith.select %20, %7, %21 : vector<16x32xi1>, vector<16x32xf32>
    %cst_10 = arith.constant dense<0.000000e+00> : vector<16xf32>
    %23 = vector.multi_reduction <add>, %22, %cst_10 [1] : vector<16x32xf32> to vector<16xf32>
    %24 = vector.shape_cast %23 : vector<16xf32> to vector<16x1xf32>
    %c-1_i32 = arith.constant -1 : i32
    %25 = vector.broadcast %c-1_i32 : i32 to vector<16x1xi32>
    %26 = arith.cmpi ne, %9, %25 : vector<16x1xi32>
    %27 = arith.extui %26 : vector<16x1xi1> to vector<16x1xi32>
    %28 = arith.sitofp %27 : vector<16x1xi32> to vector<16x1xf32>
    %29 = arith.subf %18, %24 : vector<16x1xf32>
    %30 = arith.mulf %29, %28 : vector<16x1xf32>
    %cst_11 = arith.constant dense<0.000000e+00> : vector<1xf32>
    %31 = vector.multi_reduction <add>, %30, %cst_11 [0] : vector<16x1xf32> to vector<1xf32>
    %32 = vector.shape_cast %31 : vector<1xf32> to vector<1x1xf32>
    %c0_12 = arith.constant 0 : index
    %c0_13 = arith.constant 0 : index
    %33 = vector.load %arg5[%c0_12, %c0_13] : memref<1x1xf32, #tpu.memory_space<vmem>>, vector<1x1xf32>
    tpu.vector_store %arg5[%c0_12, %c0_13], %32 {strides = array<i32>} : memref<1x1xf32, #tpu.memory_space<vmem>>, vector<1x1xf32>,
    %cst_14 = arith.constant dense<0.000000e+00> : vector<1xf32>
    %34 = vector.multi_reduction <add>, %28, %cst_14 [0] : vector<16x1xf32> to vector<1xf32>
    %35 = vector.shape_cast %34 : vector<1xf32> to vector<1x1xf32>
    %c0_15 = arith.constant 0 : index
    %c0_16 = arith.constant 0 : index
    %36 = vector.load %arg6[%c0_15, %c0_16] : memref<1x1xf32, #tpu.memory_space<vmem>>, vector<1x1xf32>
    tpu.vector_store %arg6[%c0_15, %c0_16], %35 {strides = array<i32>} : memref<1x1xf32, #tpu.memory_space<vmem>>, vector<1x1xf32>,
    return
  }
  func.func @transform_0(%arg0: i32) -> (i32, i32) {
    %c0_i32 = arith.constant 0 : i32
    %c0_i32_0 = arith.constant 0 : i32
    return %arg0, %c0_i32 : i32, i32
  }
  func.func @transform_1(%arg0: i32) -> (i32, i32) {
    %c0_i32 = arith.constant 0 : i32
    %c0_i32_0 = arith.constant 0 : i32
    return %arg0, %c0_i32 : i32, i32
  }
  func.func @transform_2(%arg0: i32) -> (i32, i32) {
    %c0_i32 = arith.constant 0 : i32
    %c0_i32_0 = arith.constant 0 : i32
    %c0_i32_1 = arith.constant 0 : i32
    return %c0_i32, %c0_i32_0 : i32, i32
  }
  func.func @transform_3(%arg0: i32) -> (i32, i32) {
    %c0_i32 = arith.constant 0 : i32
    %c0_i32_0 = arith.constant 0 : i32
    return %arg0, %c0_i32 : i32, i32
  }
  func.func @transform_4(%arg0: i32) -> (i32, i32) {
    %c0_i32 = arith.constant 0 : i32
    %c0_i32_0 = arith.constant 0 : i32
    return %arg0, %c0_i32 : i32, i32
  }
  func.func @transform_5(%arg0: i32) -> (i32, i32) {
    %c0_i32 = arith.constant 0 : i32
    %c0_i32_0 = arith.constant 0 : i32
    return %arg0, %c0_i32 : i32, i32
  }
}

</mosaic_0001>

<llo_original>
// kernel: tpu_custom_call.1
$region0: #{tpu_custom_call.1}
  #allocation0 [shape = 'u32[]', space=smem, size = 0x4, offset = 0x4, fixed_abs, tag = 'smem constant byte address 0x4 - core index']
  #allocation1 [shape = 'u32[144,128]{1,0:T(1,128)}', space=vmem, size = 0x12000, scoped, tag = 'internal scratch']
  %s0 = inlined_call_operand.vmem [shape: s32[16,1], index: 0, kind: input, shape index: {}]
  %s1 = inlined_call_operand.vmem [shape: s32[16,1], index: 1, kind: input, shape index: {}]
  %s2 = inlined_call_operand.vmem [shape: f32[32,32], index: 2, kind: input, shape index: {}]
  %s3 = inlined_call_operand.hbm [shape: f32[16,32], index: 3, kind: output, shape index: {0}]
  %s4 = inlined_call_operand.hbm [shape: f32[1,1], index: 4, kind: output, shape index: {1}]
  %s5 = inlined_call_operand.hbm [shape: f32[1,1], index: 5, kind: output, shape index: {2}]
  %6 = xla_tuple %s3, %s4, %s5
  %s7 = sld [smem:[#allocation0]]
  $region38: #{tpu_custom_call.1} parent=0
    _
  %s9 = ssub.s32 1, %s7
  %s10 = scalar_select 0, %s9, %s7
  $region1: #{tpu_custom_call.1} parent=0
    #allocation2 [shape = 'u8[8192]{0}', space=vmem, size = 0x2000, scoped, tag = 'output window, operand 0, single buffered']
    #allocation3 [shape = 's32[1]{0}', space=sflag, size = 0x4, scoped, tag = 'scoped memory for tpu_custom_call.1']
    #allocation4 [shape = 'u8[512]{0}', space=vmem, size = 0x400, scoped, tag = 'output window, operand 1, single buffered']
    #allocation5 [shape = 's32[1]{0}', space=sflag, size = 0x4, scoped, tag = 'scoped memory for tpu_custom_call.1']
    #allocation6 [shape = 'u8[512]{0}', space=vmem, size = 0x400, scoped, tag = 'output window, operand 2, single buffered']
    %11 = vsyncpa [#allocation3], 0
    %12 = vsyncpa [#allocation5], 0
    // Predicated region
    $region2: #{tpu_custom_call.1} parent=1 // pred_check
      _
    $region3: #{tpu_custom_call.1} parent=1 // pred_check_branch
      %14 = sbr.rel (0) target = $region5
    $region4: #{tpu_custom_call.1} parent=1 // pred_region
      _
    $region5: #{tpu_custom_call.1} parent=1 // pred_fallthru
      _
    // Predicated region
    $region6: #{tpu_custom_call.1} parent=1 // pred_check
      _
    $region7: #{tpu_custom_call.1} parent=1 // pred_check_branch
      %16 = sbr.rel (0) target = $region9
    $region8: #{tpu_custom_call.1} parent=1 // pred_region
      _
    $region9: #{tpu_custom_call.1} parent=1 // pred_fallthru
      _
    // Predicated region
    $region10: #{tpu_custom_call.1} parent=1 // pred_check
      _
    $region11: #{tpu_custom_call.1} parent=1 // pred_check_branch
      %18 = sbr.rel (0) target = $region13
    $region12: #{tpu_custom_call.1} parent=1 // pred_region
      _
    $region13: #{tpu_custom_call.1} parent=1 // pred_fallthru
      _
    %v19 = vlaneseq
    %v20 = vand.u32 %v19, 127
    %v21 = vld [vmem:[%s0] sm:$0xff]
    %v22 = vld [vmem:[%s0 + $0x8] sm:$0xff]
    %23 = vset.pattern.permute.xlu0 0
    %24 = vperm.xlu0 %23, %v21
    %v25 = vpop.permute.xlu0 %24
    %26 = vset.pattern.permute.xlu0 0
    %27 = vperm.xlu0 %26, %v22
    %v28 = vpop.permute.xlu0 %27
    %vm29 = vcmp.eq.s32.totalorder %v20, %v25
    %vm30 = vcmp.eq.s32.totalorder %v20, %v28
    %v31 = vsel %vm29, 1, 0
    %v32 = vsel %vm30, 1, 0
    %v33 = vcvt.s32.f32 %v31
    %v34 = vcvt.s32.f32 %v32
    %v35 = vld [vmem:[%s2] sm:$0xff]
    %v36 = vld [vmem:[%s2 + $0x8] sm:$0xff]
    %v37 = vld [vmem:[%s2 + $0x10] sm:$0xff]
    %v38 = vld [vmem:[%s2 + $0x18] sm:$0xff]
    %vm39 = vcmask 261120
    %v41 = vsel %vm39, %v33, 0
    %v44 = vsel %vm39, %v34, 0
    %46 = vmatprep.subr.mxu0 0.0
    %v47 = vand.u32 %v35, 4294901760
    %48 = vmatpush1.msra.mxu0 %v47
    %49 = vmatprep.subr.mxu0 0.0
    %v50 = vand.u32 %v36, 4294901760
    %51 = vmatpush1.msra.mxu0 %v50
    %52 = vmatprep.subr.mxu0 0.0
    %v53 = vand.u32 %v37, 4294901760
    %54 = vmatpush1.msra.mxu0 %v53
    %55 = vmatprep.subr.mxu0 0.0
    %v56 = vand.u32 %v38, 4294901760
    %57 = vmatpush1.msra.mxu0 %v56
    %58 = vmatprep.subr.mxu0 0.0
    %59 = vmatpush1.msra.mxu0 0.0
    %60 = vmatprep.subr.mxu0 0.0
    %61 = vmatpush1.msra.mxu0 0.0
    %62 = vmatprep.subr.mxu0 0.0
    %63 = vmatpush1.msra.mxu0 0.0
    %64 = vmatprep.subr.mxu0 0.0
    %65 = vmatpush1.msra.mxu0 0.0
    %66 = vmatprep.subr.mxu0 0.0
    %67 = vmatpush1.msra.mxu0 0.0
    %68 = vmatprep.subr.mxu0 0.0
    %69 = vmatpush1.msra.mxu0 0.0
    %70 = vmatprep.subr.mxu0 0.0
    %71 = vmatpush1.msra.mxu0 0.0
    %72 = vmatprep.subr.mxu0 0.0
    %73 = vmatpush1.msra.mxu0 0.0
    %74 = vmatprep.subr.mxu0 0.0
    %75 = vmatpush1.msra.mxu0 0.0
    %76 = vmatprep.subr.mxu0 0.0
    %77 = vmatpush1.msra.mxu0 0.0
    %78 = vmatprep.subr.mxu0 0.0
    %79 = vmatpush1.msra.mxu0 0.0
    %80 = vmatprep.subr.mxu0 0.0
    %81 = vmatpush1.msra.mxu0 0.0
    %82 = vmatprep.subr.mxu0 0.0
    %83 = vmatpush1.msra.mxu0 0.0
    %84 = vmatprep.subr.mxu0 0.0
    %85 = vmatpush1.msra.mxu0 0.0
    %86 = vmatprep.subr.mxu0 0.0
    %87 = vmatpush1.msra.mxu0 0.0
    %88 = vmatprep.subr.mxu0 0.0
    %89 = vmatpush1.msra.mxu0 0.0
    %90 = vmatprep.subr.mxu0 0.0
    %91 = vmatpush1.msra.mxu0 0.0
    %92 = vmatprep.subr.mxu0 0.0
    %93 = vmatpush1.msra.mxu0 0.0
    %94 = vmatprep.subr.mxu0 0.0
    %95 = vmatpush1.msra.mxu0 0.0
    %96 = vmatprep.subr.mxu0 0.0
    %97 = vmatpush1.msra.mxu0 0.0
    %98 = vmatprep.subr.mxu0 0.0
    %99 = vmatpush1.msra.mxu0 0.0
    %100 = vmatprep.subr.mxu0 0.0
    %101 = vmatpush1.msra.mxu0 0.0
    %102 = vmatprep.subr.mxu0 0.0
    %103 = vmatpush1.msra.mxu0 0.0
    %104 = vmatprep.subr.mxu0 0.0
    %105 = vmatpush1.msra.mxu0 0.0
    %106 = vmatprep.subr.mxu0 0.0
    %107 = vmatpush1.msra.mxu0 0.0
    %108 = vmatprep.subr.mxu0 0.0
    %109 = vmatpush1.msra.mxu0 0.0
    %110 = vmatprep.subr.mxu0 0.0
    %111 = vmatpush1.msra.mxu0 0.0
    %112 = vmatprep.subr.mxu0 0.0
    %113 = vmatpush1.msra.mxu0 0.0
    %114 = vmatprep.mubr.f32.mxu0 0.0
    %v115 = vand.u32 %v41, 4294901760
    %v116 = vsub.f32 %v41, %v115
    %v117 = vand.u32 %v116, 4294901760
    %v118 = vsub.f32 %v116, %v117
    %v119 = vand.u32 %v118, 4294901760
    %120 = vmatmul.mubr.f32.gmra.mrb[0].mxu0 %v119
    %v121 = vpop.f32.mrb[0].mxu0
    %v122 = vadd.f32 0.0, %v121
    %v123 = vpop.f32.mrb[0].mxu0
    %124 = vmatprep.mubr.f32.mxu0 0.0
    %v125 = vand.u32 %v44, 4294901760
    %v126 = vsub.f32 %v44, %v125
    %v127 = vand.u32 %v126, 4294901760
    %v128 = vsub.f32 %v126, %v127
    %v129 = vand.u32 %v128, 4294901760
    %130 = vmatmul.mubr.f32.gmra.mrb[0].mxu0 %v129
    %v131 = vpop.f32.mrb[0].mxu0
    %v132 = vadd.f32 0.0, %v131
    %v133 = vpop.f32.mrb[0].mxu0
    %134 = vdwg.mxu0
    %135 = vmatprep.subr.mxu0 0.0
    %v136 = vand.u32 %v35, 4294901760
    %v137 = vsub.f32 %v35, %v136
    %v138 = vand.u32 %v137, 4294901760
    %v139 = vsub.f32 %v137, %v138
    %v140 = vand.u32 %v139, 4294901760
    %141 = vmatpush1.msra.mxu0 %v140
    %142 = vmatprep.subr.mxu0 0.0
    %v143 = vand.u32 %v36, 4294901760
    %v144 = vsub.f32 %v36, %v143
    %v145 = vand.u32 %v144, 4294901760
    %v146 = vsub.f32 %v144, %v145
    %v147 = vand.u32 %v146, 4294901760
    %148 = vmatpush1.msra.mxu0 %v147
    %149 = vmatprep.subr.mxu0 0.0
    %v150 = vand.u32 %v37, 4294901760
    %v151 = vsub.f32 %v37, %v150
    %v152 = vand.u32 %v151, 4294901760
    %v153 = vsub.f32 %v151, %v152
    %v154 = vand.u32 %v153, 4294901760
    %155 = vmatpush1.msra.mxu0 %v154
    %156 = vmatprep.subr.mxu0 0.0
    %v157 = vand.u32 %v38, 4294901760
    %v158 = vsub.f32 %v38, %v157
    %v159 = vand.u32 %v158, 4294901760
    %v160 = vsub.f32 %v158, %v159
    %v161 = vand.u32 %v160, 4294901760
    %162 = vmatpush1.msra.mxu0 %v161
    %163 = vmatprep.subr.mxu0 0.0
    %164 = vmatpush1.msra.mxu0 0.0
    %165 = vmatprep.subr.mxu0 0.0
    %166 = vmatpush1.msra.mxu0 0.0
    %167 = vmatprep.subr.mxu0 0.0
    %168 = vmatpush1.msra.mxu0 0.0
    %169 = vmatprep.subr.mxu0 0.0
    %170 = vmatpush1.msra.mxu0 0.0
    %171 = vmatprep.subr.mxu0 0.0
    %172 = vmatpush1.msra.mxu0 0.0
    %173 = vmatprep.subr.mxu0 0.0
    %174 = vmatpush1.msra.mxu0 0.0
    %175 = vmatprep.subr.mxu0 0.0
    %176 = vmatpush1.msra.mxu0 0.0
    %177 = vmatprep.subr.mxu0 0.0
    %178 = vmatpush1.msra.mxu0 0.0
    %179 = vmatprep.subr.mxu0 0.0
    %180 = vmatpush1.msra.mxu0 0.0
    %181 = vmatprep.subr.mxu0 0.0
    %182 = vmatpush1.msra.mxu0 0.0
    %183 = vmatprep.subr.mxu0 0.0
    %184 = vmatpush1.msra.mxu0 0.0
    %185 = vmatprep.subr.mxu0 0.0
    %186 = vmatpush1.msra.mxu0 0.0
    %187 = vmatprep.subr.mxu0 0.0
    %188 = vmatpush1.msra.mxu0 0.0
    %189 = vmatprep.subr.mxu0 0.0
    %190 = vmatpush1.msra.mxu0 0.0
    %191 = vmatprep.subr.mxu0 0.0
    %192 = vmatpush1.msra.mxu0 0.0
    %193 = vmatprep.subr.mxu0 0.0
    %194 = vmatpush1.msra.mxu0 0.0
    %195 = vmatprep.subr.mxu0 0.0
    %196 = vmatpush1.msra.mxu0 0.0
    %197 = vmatprep.subr.mxu0 0.0
    %198 = vmatpush1.msra.mxu0 0.0
    %199 = vmatprep.subr.mxu0 0.0
    %200 = vmatpush1.msra.mxu0 0.0
    %201 = vmatprep.subr.mxu0 0.0
    %202 = vmatpush1.msra.mxu0 0.0
    %203 = vmatprep.subr.mxu0 0.0
    %204 = vmatpush1.msra.mxu0 0.0
    %205 = vmatprep.subr.mxu0 0.0
    %206 = vmatpush1.msra.mxu0 0.0
    %207 = vmatprep.subr.mxu0 0.0
    %208 = vmatpush1.msra.mxu0 0.0
    %209 = vmatprep.subr.mxu0 0.0
    %210 = vmatpush1.msra.mxu0 0.0
    %211 = vmatprep.subr.mxu0 0.0
    %212 = vmatpush1.msra.mxu0 0.0
    %213 = vmatprep.subr.mxu0 0.0
    %214 = vmatpush1.msra.mxu0 0.0
    %215 = vmatprep.subr.mxu0 0.0
    %216 = vmatpush1.msra.mxu0 0.0
    %217 = vmatprep.subr.mxu0 0.0
    %218 = vmatpush1.msra.mxu0 0.0
    %219 = vmatprep.mubr.f32.mxu0 0.0
    %v220 = vand.u32 %v41, 4294901760
    %221 = vmatmul.mubr.f32.gmra.mrb[0].mxu0 %v220
    %v222 = vpop.f32.mrb[0].mxu0
    %v223 = vadd.f32 %v122, %v222
    %v224 = vpop.f32.mrb[0].mxu0
    %225 = vmatprep.mubr.f32.mxu0 0.0
    %v226 = vand.u32 %v44, 4294901760
    %227 = vmatmul.mubr.f32.gmra.mrb[0].mxu0 %v226
    %v228 = vpop.f32.mrb[0].mxu0
    %v229 = vadd.f32 %v132, %v228
    %v230 = vpop.f32.mrb[0].mxu0
    %231 = vdwg.mxu0
    %232 = vmatprep.subr.mxu0 0.0
    %v233 = vand.u32 %v35, 4294901760
    %v234 = vsub.f32 %v35, %v233
    %235 = vmatpush1.msra.mxu0 %v234
    %236 = vmatprep.subr.mxu0 0.0
    %v237 = vand.u32 %v36, 4294901760
    %v238 = vsub.f32 %v36, %v237
    %239 = vmatpush1.msra.mxu0 %v238
    %240 = vmatprep.subr.mxu0 0.0
    %v241 = vand.u32 %v37, 4294901760
    %v242 = vsub.f32 %v37, %v241
    %243 = vmatpush1.msra.mxu0 %v242
    %244 = vmatprep.subr.mxu0 0.0
    %v245 = vand.u32 %v38, 4294901760
    %v246 = vsub.f32 %v38, %v245
    %247 = vmatpush1.msra.mxu0 %v246
    %248 = vmatprep.subr.mxu0 0.0
    %249 = vmatpush1.msra.mxu0 0.0
    %250 = vmatprep.subr.mxu0 0.0
    %251 = vmatpush1.msra.mxu0 0.0
    %252 = vmatprep.subr.mxu0 0.0
    %253 = vmatpush1.msra.mxu0 0.0
    %254 = vmatprep.subr.mxu0 0.0
    %255 = vmatpush1.msra.mxu0 0.0
    %256 = vmatprep.subr.mxu0 0.0
    %257 = vmatpush1.msra.mxu0 0.0
    %258 = vmatprep.subr.mxu0 0.0
    %259 = vmatpush1.msra.mxu0 0.0
    %260 = vmatprep.subr.mxu0 0.0
    %261 = vmatpush1.msra.mxu0 0.0
    %262 = vmatprep.subr.mxu0 0.0
    %263 = vmatpush1.msra.mxu0 0.0
    %264 = vmatprep.subr.mxu0 0.0
    %265 = vmatpush1.msra.mxu0 0.0
    %266 = vmatprep.subr.mxu0 0.0
    %267 = vmatpush1.msra.mxu0 0.0
    %268 = vmatprep.subr.mxu0 0.0
    %269 = vmatpush1.msra.mxu0 0.0
    %270 = vmatprep.subr.mxu0 0.0
    %271 = vmatpush1.msra.mxu0 0.0
    %272 = vmatprep.subr.mxu0 0.0
    %273 = vmatpush1.msra.mxu0 0.0
    %274 = vmatprep.subr.mxu0 0.0
    %275 = vmatpush1.msra.mxu0 0.0
    %276 = vmatprep.subr.mxu0 0.0
    %277 = vmatpush1.msra.mxu0 0.0
    %278 = vmatprep.subr.mxu0 0.0
    %279 = vmatpush1.msra.mxu0 0.0
    %280 = vmatprep.subr.mxu0 0.0
    %281 = vmatpush1.msra.mxu0 0.0
    %282 = vmatprep.subr.mxu0 0.0
    %283 = vmatpush1.msra.mxu0 0.0
    %284 = vmatprep.subr.mxu0 0.0
    %285 = vmatpush1.msra.mxu0 0.0
    %286 = vmatprep.subr.mxu0 0.0
    %287 = vmatpush1.msra.mxu0 0.0
    %288 = vmatprep.subr.mxu0 0.0
    %289 = vmatpush1.msra.mxu0 0.0
    %290 = vmatprep.subr.mxu0 0.0
    %291 = vmatpush1.msra.mxu0 0.0
    %292 = vmatprep.subr.mxu0 0.0
    %293 = vmatpush1.msra.mxu0 0.0
    %294 = vmatprep.subr.mxu0 0.0
    %295 = vmatpush1.msra.mxu0 0.0
    %296 = vmatprep.subr.mxu0 0.0
    %297 = vmatpush1.msra.mxu0 0.0
    %298 = vmatprep.subr.mxu0 0.0
    %299 = vmatpush1.msra.mxu0 0.0
    %300 = vmatprep.subr.mxu0 0.0
    %301 = vmatpush1.msra.mxu0 0.0
    %302 = vmatprep.subr.mxu0 0.0
    %303 = vmatpush1.msra.mxu0 0.0
    %304 = vmatprep.mubr.f32.mxu0 0.0
    %v305 = vand.u32 %v41, 4294901760
    %v306 = vsub.f32 %v41, %v305
    %307 = vmatmul.mubr.f32.gmra.mrb[0].mxu0 %v306
    %v308 = vpop.f32.mrb[0].mxu0
    %v309 = vadd.f32 %v223, %v308
    %v310 = vpop.f32.mrb[0].mxu0
    %311 = vmatprep.mubr.f32.mxu0 0.0
    %v312 = vand.u32 %v44, 4294901760
    %v313 = vsub.f32 %v44, %v312
    %314 = vmatmul.mubr.f32.gmra.mrb[0].mxu0 %v313
    %v315 = vpop.f32.mrb[0].mxu0
    %v316 = vadd.f32 %v229, %v315
    %v317 = vpop.f32.mrb[0].mxu0
    %318 = vdwg.mxu0
    %319 = vmatprep.subr.mxu0 0.0
    %v320 = vand.u32 %v35, 4294901760
    %321 = vmatpush1.msra.mxu0 %v320
    %322 = vmatprep.subr.mxu0 0.0
    %v323 = vand.u32 %v36, 4294901760
    %324 = vmatpush1.msra.mxu0 %v323
    %325 = vmatprep.subr.mxu0 0.0
    %v326 = vand.u32 %v37, 4294901760
    %327 = vmatpush1.msra.mxu0 %v326
    %328 = vmatprep.subr.mxu0 0.0
    %v329 = vand.u32 %v38, 4294901760
    %330 = vmatpush1.msra.mxu0 %v329
    %331 = vmatprep.subr.mxu0 0.0
    %332 = vmatpush1.msra.mxu0 0.0
    %333 = vmatprep.subr.mxu0 0.0
    %334 = vmatpush1.msra.mxu0 0.0
    %335 = vmatprep.subr.mxu0 0.0
    %336 = vmatpush1.msra.mxu0 0.0
    %337 = vmatprep.subr.mxu0 0.0
    %338 = vmatpush1.msra.mxu0 0.0
    %339 = vmatprep.subr.mxu0 0.0
    %340 = vmatpush1.msra.mxu0 0.0
    %341 = vmatprep.subr.mxu0 0.0
    %342 = vmatpush1.msra.mxu0 0.0
    %343 = vmatprep.subr.mxu0 0.0
    %344 = vmatpush1.msra.mxu0 0.0
    %345 = vmatprep.subr.mxu0 0.0
    %346 = vmatpush1.msra.mxu0 0.0
    %347 = vmatprep.subr.mxu0 0.0
    %348 = vmatpush1.msra.mxu0 0.0
    %349 = vmatprep.subr.mxu0 0.0
    %350 = vmatpush1.msra.mxu0 0.0
    %351 = vmatprep.subr.mxu0 0.0
    %352 = vmatpush1.msra.mxu0 0.0
    %353 = vmatprep.subr.mxu0 0.0
    %354 = vmatpush1.msra.mxu0 0.0
    %355 = vmatprep.subr.mxu0 0.0
    %356 = vmatpush1.msra.mxu0 0.0
    %357 = vmatprep.subr.mxu0 0.0
    %358 = vmatpush1.msra.mxu0 0.0
    %359 = vmatprep.subr.mxu0 0.0
    %360 = vmatpush1.msra.mxu0 0.0
    %361 = vmatprep.subr.mxu0 0.0
    %362 = vmatpush1.msra.mxu0 0.0
    %363 = vmatprep.subr.mxu0 0.0
    %364 = vmatpush1.msra.mxu0 0.0
    %365 = vmatprep.subr.mxu0 0.0
    %366 = vmatpush1.msra.mxu0 0.0
    %367 = vmatprep.subr.mxu0 0.0
    %368 = vmatpush1.msra.mxu0 0.0
    %369 = vmatprep.subr.mxu0 0.0
    %370 = vmatpush1.msra.mxu0 0.0
    %371 = vmatprep.subr.mxu0 0.0
    %372 = vmatpush1.msra.mxu0 0.0
    %373 = vmatprep.subr.mxu0 0.0
    %374 = vmatpush1.msra.mxu0 0.0
    %375 = vmatprep.subr.mxu0 0.0
    %376 = vmatpush1.msra.mxu0 0.0
    %377 = vmatprep.subr.mxu0 0.0
    %378 = vmatpush1.msra.mxu0 0.0
    %379 = vmatprep.subr.mxu0 0.0
    %380 = vmatpush1.msra.mxu0 0.0
    %381 = vmatprep.subr.mxu0 0.0
    %382 = vmatpush1.msra.mxu0 0.0
    %383 = vmatprep.subr.mxu0 0.0
    %384 = vmatpush1.msra.mxu0 0.0
    %385 = vmatprep.subr.mxu0 0.0
    %386 = vmatpush1.msra.mxu0 0.0
    %387 = vmatprep.mubr.f32.mxu0 0.0
    %v388 = vand.u32 %v41, 4294901760
    %v389 = vsub.f32 %v41, %v388
    %v390 = vand.u32 %v389, 4294901760
    %391 = vmatmul.mubr.f32.gmra.mrb[0].mxu0 %v390
    %v392 = vpop.f32.mrb[0].mxu0
    %v393 = vadd.f32 %v309, %v392
    %v394 = vpop.f32.mrb[0].mxu0
    %395 = vmatprep.mubr.f32.mxu0 0.0
    %v396 = vand.u32 %v44, 4294901760
    %v397 = vsub.f32 %v44, %v396
    %v398 = vand.u32 %v397, 4294901760
    %399 = vmatmul.mubr.f32.gmra.mrb[0].mxu0 %v398
    %v400 = vpop.f32.mrb[0].mxu0
    %v401 = vadd.f32 %v316, %v400
    %v402 = vpop.f32.mrb[0].mxu0
    %403 = vdwg.mxu0
    %404 = vmatprep.subr.mxu0 0.0
    %v405 = vand.u32 %v35, 4294901760
    %v406 = vsub.f32 %v35, %v405
    %v407 = vand.u32 %v406, 4294901760
    %408 = vmatpush1.msra.mxu0 %v407
    %409 = vmatprep.subr.mxu0 0.0
    %v410 = vand.u32 %v36, 4294901760
    %v411 = vsub.f32 %v36, %v410
    %v412 = vand.u32 %v411, 4294901760
    %413 = vmatpush1.msra.mxu0 %v412
    %414 = vmatprep.subr.mxu0 0.0
    %v415 = vand.u32 %v37, 4294901760
    %v416 = vsub.f32 %v37, %v415
    %v417 = vand.u32 %v416, 4294901760
    %418 = vmatpush1.msra.mxu0 %v417
    %419 = vmatprep.subr.mxu0 0.0
    %v420 = vand.u32 %v38, 4294901760
    %v421 = vsub.f32 %v38, %v420
    %v422 = vand.u32 %v421, 4294901760
    %423 = vmatpush1.msra.mxu0 %v422
    %424 = vmatprep.subr.mxu0 0.0
    %425 = vmatpush1.msra.mxu0 0.0
    %426 = vmatprep.subr.mxu0 0.0
    %427 = vmatpush1.msra.mxu0 0.0
    %428 = vmatprep.subr.mxu0 0.0
    %429 = vmatpush1.msra.mxu0 0.0
    %430 = vmatprep.subr.mxu0 0.0
    %431 = vmatpush1.msra.mxu0 0.0
    %432 = vmatprep.subr.mxu0 0.0
    %433 = vmatpush1.msra.mxu0 0.0
    %434 = vmatprep.subr.mxu0 0.0
    %435 = vmatpush1.msra.mxu0 0.0
    %436 = vmatprep.subr.mxu0 0.0
    %437 = vmatpush1.msra.mxu0 0.0
    %438 = vmatprep.subr.mxu0 0.0
    %439 = vmatpush1.msra.mxu0 0.0
    %440 = vmatprep.subr.mxu0 0.0
    %441 = vmatpush1.msra.mxu0 0.0
    %442 = vmatprep.subr.mxu0 0.0
    %443 = vmatpush1.msra.mxu0 0.0
    %444 = vmatprep.subr.mxu0 0.0
    %445 = vmatpush1.msra.mxu0 0.0
    %446 = vmatprep.subr.mxu0 0.0
    %447 = vmatpush1.msra.mxu0 0.0
    %448 = vmatprep.subr.mxu0 0.0
    %449 = vmatpush1.msra.mxu0 0.0
    %450 = vmatprep.subr.mxu0 0.0
    %451 = vmatpush1.msra.mxu0 0.0
    %452 = vmatprep.subr.mxu0 0.0
    %453 = vmatpush1.msra.mxu0 0.0
    %454 = vmatprep.subr.mxu0 0.0
    %455 = vmatpush1.msra.mxu0 0.0
    %456 = vmatprep.subr.mxu0 0.0
    %457 = vmatpush1.msra.mxu0 0.0
    %458 = vmatprep.subr.mxu0 0.0
    %459 = vmatpush1.msra.mxu0 0.0
    %460 = vmatprep.subr.mxu0 0.0
    %461 = vmatpush1.msra.mxu0 0.0
    %462 = vmatprep.subr.mxu0 0.0
    %463 = vmatpush1.msra.mxu0 0.0
    %464 = vmatprep.subr.mxu0 0.0
    %465 = vmatpush1.msra.mxu0 0.0
    %466 = vmatprep.subr.mxu0 0.0
    %467 = vmatpush1.msra.mxu0 0.0
    %468 = vmatprep.subr.mxu0 0.0
    %469 = vmatpush1.msra.mxu0 0.0
    %470 = vmatprep.subr.mxu0 0.0
    %471 = vmatpush1.msra.mxu0 0.0
    %472 = vmatprep.subr.mxu0 0.0
    %473 = vmatpush1.msra.mxu0 0.0
    %474 = vmatprep.subr.mxu0 0.0
    %475 = vmatpush1.msra.mxu0 0.0
    %476 = vmatprep.subr.mxu0 0.0
    %477 = vmatpush1.msra.mxu0 0.0
    %478 = vmatprep.subr.mxu0 0.0
    %479 = vmatpush1.msra.mxu0 0.0
    %480 = vmatprep.mubr.f32.mxu0 0.0
    %v481 = vand.u32 %v41, 4294901760
    %482 = vmatmul.mubr.f32.gmra.mrb[0].mxu0 %v481
    %v483 = vpop.f32.mrb[0].mxu0
    %v484 = vadd.f32 %v393, %v483
    %v485 = vpop.f32.mrb[0].mxu0
    %486 = vmatprep.mubr.f32.mxu0 0.0
    %v487 = vand.u32 %v44, 4294901760
    %488 = vmatmul.mubr.f32.gmra.mrb[0].mxu0 %v487
    %v489 = vpop.f32.mrb[0].mxu0
    %v490 = vadd.f32 %v401, %v489
    %v491 = vpop.f32.mrb[0].mxu0
    %492 = vdwg.mxu0
    %493 = vmatprep.subr.mxu0 0.0
    %v494 = vand.u32 %v35, 4294901760
    %495 = vmatpush1.msra.mxu0 %v494
    %496 = vmatprep.subr.mxu0 0.0
    %v497 = vand.u32 %v36, 4294901760
    %498 = vmatpush1.msra.mxu0 %v497
    %499 = vmatprep.subr.mxu0 0.0
    %v500 = vand.u32 %v37, 4294901760
    %501 = vmatpush1.msra.mxu0 %v500
    %502 = vmatprep.subr.mxu0 0.0
    %v503 = vand.u32 %v38, 4294901760
    %504 = vmatpush1.msra.mxu0 %v503
    %505 = vmatprep.subr.mxu0 0.0
    %506 = vmatpush1.msra.mxu0 0.0
    %507 = vmatprep.subr.mxu0 0.0
    %508 = vmatpush1.msra.mxu0 0.0
    %509 = vmatprep.subr.mxu0 0.0
    %510 = vmatpush1.msra.mxu0 0.0
    %511 = vmatprep.subr.mxu0 0.0
    %512 = vmatpush1.msra.mxu0 0.0
    %513 = vmatprep.subr.mxu0 0.0
    %514 = vmatpush1.msra.mxu0 0.0
    %515 = vmatprep.subr.mxu0 0.0
    %516 = vmatpush1.msra.mxu0 0.0
    %517 = vmatprep.subr.mxu0 0.0
    %518 = vmatpush1.msra.mxu0 0.0
    %519 = vmatprep.subr.mxu0 0.0
    %520 = vmatpush1.msra.mxu0 0.0
    %521 = vmatprep.subr.mxu0 0.0
    %522 = vmatpush1.msra.mxu0 0.0
    %523 = vmatprep.subr.mxu0 0.0
    %524 = vmatpush1.msra.mxu0 0.0
    %525 = vmatprep.subr.mxu0 0.0
    %526 = vmatpush1.msra.mxu0 0.0
    %527 = vmatprep.subr.mxu0 0.0
    %528 = vmatpush1.msra.mxu0 0.0
    %529 = vmatprep.subr.mxu0 0.0
    %530 = vmatpush1.msra.mxu0 0.0
    %531 = vmatprep.subr.mxu0 0.0
    %532 = vmatpush1.msra.mxu0 0.0
    %533 = vmatprep.subr.mxu0 0.0
    %534 = vmatpush1.msra.mxu0 0.0
    %535 = vmatprep.subr.mxu0 0.0
    %536 = vmatpush1.msra.mxu0 0.0
    %537 = vmatprep.subr.mxu0 0.0
    %538 = vmatpush1.msra.mxu0 0.0
    %539 = vmatprep.subr.mxu0 0.0
    %540 = vmatpush1.msra.mxu0 0.0
    %541 = vmatprep.subr.mxu0 0.0
    %542 = vmatpush1.msra.mxu0 0.0
    %543 = vmatprep.subr.mxu0 0.0
    %544 = vmatpush1.msra.mxu0 0.0
    %545 = vmatprep.subr.mxu0 0.0
    %546 = vmatpush1.msra.mxu0 0.0
    %547 = vmatprep.subr.mxu0 0.0
    %548 = vmatpush1.msra.mxu0 0.0
    %549 = vmatprep.subr.mxu0 0.0
    %550 = vmatpush1.msra.mxu0 0.0
    %551 = vmatprep.subr.mxu0 0.0
    %552 = vmatpush1.msra.mxu0 0.0
    %553 = vmatprep.subr.mxu0 0.0
    %554 = vmatpush1.msra.mxu0 0.0
    %555 = vmatprep.subr.mxu0 0.0
    %556 = vmatpush1.msra.mxu0 0.0
    %557 = vmatprep.subr.mxu0 0.0
    %558 = vmatpush1.msra.mxu0 0.0
    %559 = vmatprep.subr.mxu0 0.0
    %560 = vmatpush1.msra.mxu0 0.0
    %561 = vmatprep.mubr.f32.mxu0 0.0
    %v562 = vand.u32 %v41, 4294901760
    %563 = vmatmul.mubr.f32.gmra.mrb[0].mxu0 %v562
    %v564 = vpop.f32.mrb[0].mxu0
    %v565 = vadd.f32 %v484, %v564
    %v566 = vpop.f32.mrb[0].mxu0
    %567 = vmatprep.mubr.f32.mxu0 0.0
    %v568 = vand.u32 %v44, 4294901760
    %569 = vmatmul.mubr.f32.gmra.mrb[0].mxu0 %v568
    %v570 = vpop.f32.mrb[0].mxu0
    %v571 = vadd.f32 %v490, %v570
    %v572 = vpop.f32.mrb[0].mxu0
    %573 = vdwg.mxu0
    %574 = vst.msk [vmem:[#allocation2] sm:$0xff] %vm39, %v565
    %575 = vst.msk [vmem:[#allocation2 + $0x8] sm:$0xff] %vm39, %v571
    %v576 = vld [vmem:[%s1] sm:$0xff]
    %v577 = vld [vmem:[%s1 + $0x8] sm:$0xff]
    %v578 = vsel %vm39, %v565, -inf
    %579 = vmax.xlane.f32.xlu0 %v578
    %v580 = vpop.xlane.xlu0 %579
    %v581 = vsel %vm39, %v571, -inf
    %582 = vmax.xlane.f32.xlu0 %v581
    %v583 = vpop.xlane.xlu0 %582
    %v584 = vsub.f32 %v565, %v580
    %v585 = vsub.f32 %v571, %v583
    %v586 = vmul.f32 %v584, 1.442695
    %v587 = vpow.pop %v586
    %v588 = vmul.f32 %v585, 1.442695
    %v589 = vpow.pop %v588
    %v590 = vsel %vm39, %v587, 0.0
    %591 = vadd.xlane.f32.xlu0 %v590
    %v592 = vpop.xlane.xlu0 %591
    %v593 = vsel %vm39, %v589, 0.0
    %594 = vadd.xlane.f32.xlu0 %v593
    %v595 = vpop.xlane.xlu0 %594
    %v596 = vlog2.pop %v592
    %v597 = vmul.f32 %v596, 0.6931472
    %v598 = vlog2.pop %v595
    %v599 = vmul.f32 %v598, 0.6931472
    %v600 = vadd.f32 %v580, %v597
    %v601 = vadd.f32 %v583, %v599
    %602 = vset.pattern.permute.xlu0 0
    %603 = vperm.xlu0 %602, %v576
    %v604 = vpop.permute.xlu0 %603
    %605 = vset.pattern.permute.xlu0 0
    %606 = vperm.xlu0 %605, %v577
    %v607 = vpop.permute.xlu0 %606
    %vm608 = vcmp.eq.s32.totalorder %v20, %v604
    %vm609 = vcmp.eq.s32.totalorder %v20, %v607
    %v610 = vsel %vm608, %v565, 0.0
    %v611 = vsel %vm609, %v571, 0.0
    %v612 = vsel %vm39, %v610, 0.0
    %613 = vadd.xlane.f32.xlu0 %v612
    %v614 = vpop.xlane.xlu0 %613
    %v615 = vsel %vm39, %v611, 0.0
    %616 = vadd.xlane.f32.xlu0 %v615
    %v617 = vpop.xlane.xlu0 %616
    %vm618 = vcmp.ne.s32.totalorder %v576, 4294967295
    %vm619 = vcmp.ne.s32.totalorder %v577, 4294967295
    %v620 = vsel %vm618, 1, 0
    %v621 = vsel %vm619, 1, 0
    %v622 = vcvt.s32.f32 %v620
    %v623 = vcvt.s32.f32 %v621
    %v624 = vsub.f32 %v600, %v614
    %v625 = vsub.f32 %v601, %v617
    %v626 = vmul.f32 %v624, %v622
    %v627 = vmul.f32 %v625, %v623
    %vm628 = vcmask 7168
    %v629 = vsel %vm628, %v626, 0.0
    %v630 = vsel %vm628, %v627, 0.0
    %v631 = vadd.f32 %v629, %v630
    %v632 = vrot.slane %v631, 4
    %v633 = vadd.f32 %v631, %v632
    %v634 = vrot.slane %v633, 2
    %v635 = vadd.f32 %v633, %v634
    %v636 = vrot.slane %v635, 1
    %v637 = vadd.f32 %v635, %v636
    %vm638 = vcmask 0
    %639 = vst.msk [vmem:[#allocation4] sm:$0x1] %vm638, %v637
    %v640 = vsel %vm628, %v622, 0.0
    %v641 = vsel %vm628, %v623, 0.0
    %v642 = vadd.f32 %v640, %v641
    %v643 = vrot.slane %v642, 4
    %v644 = vadd.f32 %v642, %v643
    %v645 = vrot.slane %v644, 2
    %v646 = vadd.f32 %v644, %v645
    %v647 = vrot.slane %v646, 1
    %v648 = vadd.f32 %v646, %v647
    %649 = vst.msk [vmem:[#allocation6] sm:$0x1] %vm638, %v648
    // Predicated region
    $region14: #{tpu_custom_call.1} parent=1 // pred_check
      _
    $region15: #{tpu_custom_call.1} parent=1 // pred_check_branch
      %651 = sbr.rel (0) target = $region17
    $region16: #{tpu_custom_call.1} parent=1 // pred_region
      %s653 = ssub.s32 256, 256
      %654 = vsyncadd [#allocation3], %s653
      %s655 = sshll.u32 [#allocation2], 4
      %s656 = int_to_ptr.vmem [resolvable:$true] %s655
      %661 = dma.vmem_to_hbm [thread:$0]  %s656, 256, %s3, [#allocation3], 128, 128, 8
    $region17: #{tpu_custom_call.1} parent=1 // pred_fallthru
      _
    // Predicated region
    $region18: #{tpu_custom_call.1} parent=1 // pred_check
      _
    $region19: #{tpu_custom_call.1} parent=1 // pred_check_branch
      %663 = sbr.rel (0) target = $region21
    $region20: #{tpu_custom_call.1} parent=1 // pred_region
      %s665 = ssub.s32 16, 16
      %666 = vsyncadd [#allocation5], %s665
      %s668 = sshll.u32 [#allocation4], 4
      %s669 = int_to_ptr.vmem [resolvable:$true] %s668
      %671 = dma.vmem_to_hbm [thread:$0]  %s669, 16, %s4, [#allocation5]
    $region21: #{tpu_custom_call.1} parent=1 // pred_fallthru
      _
    // Predicated region
    $region22: #{tpu_custom_call.1} parent=1 // pred_check
      _
    $region23: #{tpu_custom_call.1} parent=1 // pred_check_branch
      %673 = sbr.rel (0) target = $region25
    $region24: #{tpu_custom_call.1} parent=1 // pred_region
      %s675 = ssub.s32 16, 16
      %676 = vsyncadd [#allocation5], %s675
      %s678 = sshll.u32 [#allocation6], 4
      %s679 = int_to_ptr.vmem [resolvable:$true] %s678
      %681 = dma.vmem_to_hbm [thread:$0]  %s679, 16, %s5, [#allocation5]
    $region25: #{tpu_custom_call.1} parent=1 // pred_fallthru
      _
    // Predicated region
    $region26: #{tpu_custom_call.1} parent=1 // pred_check
      _
    $region27: #{tpu_custom_call.1} parent=1 // pred_check_branch
      %683 = sbr.rel (0) target = $region29
    $region28: #{tpu_custom_call.1} parent=1 // pred_region
      %684 = dma.done [#allocation3], 256
    $region29: #{tpu_custom_call.1} parent=1 // pred_fallthru
      _
    // Predicated region
    $region30: #{tpu_custom_call.1} parent=1 // pred_check
      _
    $region31: #{tpu_custom_call.1} parent=1 // pred_check_branch
      %686 = sbr.rel (0) target = $region33
    $region32: #{tpu_custom_call.1} parent=1 // pred_region
      %687 = dma.done [#allocation5], 16
    $region33: #{tpu_custom_call.1} parent=1 // pred_fallthru
      _
    // Predicated region
    $region34: #{tpu_custom_call.1} parent=1 // pred_check
      _
    $region35: #{tpu_custom_call.1} parent=1 // pred_check_branch
      %689 = sbr.rel (0) target = $region37
    $region36: #{tpu_custom_call.1} parent=1 // pred_region
      %690 = dma.done [#allocation5], 16
    $region37: #{tpu_custom_call.1} parent=1 // pred_fallthru
      _
    %691 = vsyncpa [#allocation3], 1
    %692 = vsyncpa [#allocation5], 1

</llo_original>
